<compile_context>
chip_gen: v5e
topology: v5e:2x2
jax: 0.10.0
libtpu: 0.0.40
codegen_flags: <defaults>
</compile_context>

<pallas_src>
import functools

import jax
import jax.numpy as jnp
from jax.experimental import pallas as pl
from jax.experimental.pallas import tpu as pltpu


def _interp_kernel(inject_index, num_heads, psi_ref, a_ref, styled_ref, out_ref):
    """One grid step: B batch rows -> B*num_heads output latents.

    psi_ref    : SMEM (1,) f32
    a_ref      : VMEM (H, D)   = (1 - psi) * (lat_mean + coefficients @ directions)
    styled_ref : VMEM (B, L, D)
    out_ref    : VMEM (B*H, L, D)   (rows ordered b*H + h, matching repeat_interleave)
    """
    B, L, D = styled_ref.shape
    H = num_heads
    psi = psi_ref[0]

    styled = styled_ref[...]                              # (B, L, D)
    a = a_ref[...]                                        # (H, D)

    styled0 = styled[:, None, 0:1, :]                     # (B, 1, 1, D)
    # lerp(trunc, styled0, psi) = (1-psi)*trunc + psi*styled0 ; a = (1-psi)*trunc
    lerped = a[None, :, None, :] + psi * styled0          # (B, H, 1, D)

    if 0 < inject_index < L and inject_index % 8 == 0:
        # Sublane-aligned split: two direct unmasked stores, no iota/select.
        head = jnp.broadcast_to(lerped, (B, H, inject_index, D))
        out_ref[:, :inject_index, :] = head.reshape(
            B * H, inject_index, D).astype(out_ref.dtype)
        tail = jnp.broadcast_to(styled[:, None, inject_index:, :],
                                (B, H, L - inject_index, D))
        out_ref[:, inject_index:, :] = tail.reshape(
            B * H, L - inject_index, D).astype(out_ref.dtype)
    else:
        # Generic path: single full-tile select + one unmasked full-block store.
        row_idx = jax.lax.broadcasted_iota(jnp.int32, (1, 1, L, 1), 2)
        out = jnp.where(row_idx < inject_index, lerped, styled[:, None, :, :])
        out_ref[...] = out.reshape(B * H, L, D).astype(out_ref.dtype)


def _pick_batch_block(N, L, D, H, *, dtype_bytes=4, vmem_budget=24 << 20,
                      min_grid_steps=2):
    """Largest divisor-of-N batch tile whose double-buffered in+out blocks fit
    the VMEM budget, preferring >= min_grid_steps steps (v7x: 2 TensorCores)."""
    def fits(b):
        return 2 * (b * L * D + b * H * L * D) * dtype_bytes <= vmem_budget

    divisors = [b for b in range(1, N + 1) if N % b == 0 and fits(b)]
    if not divisors:
        return 1
    with_steps = [b for b in divisors if N // b >= min_grid_steps]
    return max(with_steps) if with_steps else max(divisors)


def direction_interpolator_forward(styled_latent, psi, coefficients, directions,
                                   lat_mean, *, inject_index, num_heads,
                                   block_batch=None):
    """Pallas implementation of DirectionInterpolator.interpolate (unfold=False)."""
    N, L, D = styled_latent.shape
    H, C = coefficients.shape
    assert H == num_heads and directions.shape == (C, D) and lat_mean.shape == (1, D)

    # Hoist head-invariant math out of the kernel: depends only on parameters.
    trunc = lat_mean + coefficients @ directions            # (H, D)
    a = ((1.0 - psi) * trunc).astype(jnp.float32)           # (H, D)
    psi_arr = jnp.asarray([psi], dtype=jnp.float32)

    B = block_batch if block_batch is not None else _pick_batch_block(N, L, D, H)
    assert N % B == 0, "batch tile must divide N"

    kernel = functools.partial(_interp_kernel, inject_index, num_heads)

    out = pl.pallas_call(
        kernel,
        out_shape=jax.ShapeDtypeStruct((N * H, L, D), styled_latent.dtype),
        grid=(N // B,),
        in_specs=[
            pl.BlockSpec(memory_space=pltpu.MemorySpace.SMEM),   # psi (scalar)
            pl.BlockSpec((H, D), lambda n: (0, 0)),              # (1-psi)*trunc, resident
            pl.BlockSpec((B, L, D), lambda n: (n, 0, 0)),        # styled_latent tile
        ],
        out_specs=pl.BlockSpec((B * H, L, D), lambda n: (n, 0, 0)),
        compiler_params=pltpu.CompilerParams(
            dimension_semantics=("parallel",),
            vmem_limit_bytes=48 << 20),
    )(psi_arr, a, styled_latent)
    return [out]


def _reference(styled_latent, psi, coefficients, directions, lat_mean,
               *, inject_index, num_heads):
    N = styled_latent.shape[0]
    trunc = lat_mean + coefficients @ directions                  # (H, D)
    trunc = jnp.tile(trunc, (N, 1))                               # (N*H, D)
    styled = jnp.repeat(styled_latent, num_heads, axis=0)         # (N*H, L, D)
    lerped = trunc + psi * (styled[:, 0] - trunc)                 # (N*H, D)
    head = jnp.repeat(lerped[:, None, :], inject_index, axis=1)   # (N*H, inj, D)
    tail = styled[:, inject_index:]                               # (N*H, L-inj, D)
    return jnp.concatenate([head, tail], axis=1)


if __name__ == "__main__":
    def run_case(N, L, D, n_comps, num_heads, inject_index, psi, key):
        k_dir, k_mean, k_coeff, k_styled = jax.random.split(key, 4)
        directions = jax.random.normal(k_dir, (n_comps, D), dtype=jnp.float32)
        lat_mean = jax.random.normal(k_mean, (1, D), dtype=jnp.float32)
        coefficients = 0.1 * jax.random.normal(k_coeff, (num_heads, n_comps),
                                               dtype=jnp.float32)
        styled_latent = jax.random.normal(k_styled, (N, L, D), dtype=jnp.float32)

        out = direction_interpolator_forward(
            styled_latent, psi, coefficients, directions, lat_mean,
            inject_index=inject_index, num_heads=num_heads)[0]
        out = jax.block_until_ready(out)

        ref = _reference(styled_latent, psi, coefficients, directions, lat_mean,
                         inject_index=inject_index, num_heads=num_heads)
        assert out.shape == (N * num_heads, L, D)
        assert jnp.allclose(out, ref, atol=1e-5, rtol=1e-5)

    key = jax.random.PRNGKey(0)
    k1, k2 = jax.random.split(key)

    # Case 1: unaligned inject_index -> full-tile where/select path.
    run_case(N=2, L=8, D=512, n_comps=8, num_heads=2, inject_index=4, psi=0.7, key=k1)
    # Case 2: sublane-aligned inject_index -> split unmasked-store path.
    run_case(N=4, L=16, D=512, n_comps=8, num_heads=2, inject_index=8, psi=0.7, key=k2)

    print("KERNEL_OK")
</pallas_src>

<mosaic_0001>
module attributes {stable_mosaic.version = 11 : i64} {
  func.func @_interp_kernel(%arg0: i32, %arg1: memref<1xf32, #tpu.memory_space<smem>>, %arg2: memref<2x512xf32, #tpu.memory_space<vmem>>, %arg3: memref<1x8x512xf32, #tpu.memory_space<vmem>>, %arg4: memref<2x8x512xf32, #tpu.memory_space<vmem>>) attributes {dimension_semantics = [#tpu.dimension_semantics<parallel>], iteration_bounds = array<i64: 2>, scalar_prefetch = 0 : i64, scratch_operands = 0 : i64, tpu.core_type = #tpu.core_type<tc>, window_params = [{transform_indices = @transform_0, window_bounds = array<i64: 1>}, {pipeline_mode = #tpu.pipeline_mode<synchronous>, transform_indices = @transform_1, window_bounds = array<i64: 2, 512>}, {transform_indices = @transform_2, window_bounds = array<i64: 1, 8, 512>}, {transform_indices = @transform_3, window_bounds = array<i64: 2, 8, 512>}]} {
    %c0 = arith.constant 0 : index
    %0 = memref.load %arg1[%c0] : memref<1xf32, #tpu.memory_space<smem>>
    %c0_0 = arith.constant 0 : index
    %c0_1 = arith.constant 0 : index
    %c0_2 = arith.constant 0 : index
    %1 = vector.load %arg3[%c0_0, %c0_1, %c0_2] : memref<1x8x512xf32, #tpu.memory_space<vmem>>, vector<1x8x512xf32>
    %c0_3 = arith.constant 0 : index
    %c0_4 = arith.constant 0 : index
    %2 = vector.load %arg2[%c0_3, %c0_4] : memref<2x512xf32, #tpu.memory_space<vmem>>, vector<2x512xf32>
    %3 = vector.extract_strided_slice %1 {offsets = [0, 0, 0], sizes = [1, 1, 512], strides = [1, 1, 1]} : vector<1x8x512xf32> to vector<1x1x512xf32>
    %4 = vector.shape_cast %3 : vector<1x1x512xf32> to vector<1x1x1x512xf32>
    %5 = vector.shape_cast %2 : vector<2x512xf32> to vector<1x2x1x512xf32>
    %6 = vector.broadcast %0 : f32 to vector<1x1x1x512xf32>
    %7 = arith.mulf %6, %4 : vector<1x1x1x512xf32>
    %8 = vector.broadcast %7 : vector<1x1x1x512xf32> to vector<1x2x1x512xf32>
    %9 = arith.addf %5, %8 : vector<1x2x1x512xf32>
    %10 = tpu.iota {dimensions = array<i32: 2>} : vector<1x1x8x1xi32>
    %c4_i32 = arith.constant 4 : i32
    %11 = vector.broadcast %c4_i32 : i32 to vector<1x1x8x1xi32>
    %12 = arith.cmpi slt, %10, %11 : vector<1x1x8x1xi32>
    %13 = vector.shape_cast %1 : vector<1x8x512xf32> to vector<1x1x8x512xf32>
    %14 = vector.shape_cast %12 : vector<1x1x8x1xi1> to vector<1x1x8x1xi1>
    %15 = vector.broadcast %14 : vector<1x1x8x1xi1> to vector<1x2x8x512xi1>
    %16 = vector.shape_cast %9 : vector<1x2x1x512xf32> to vector<1x2x1x512xf32>
    %17 = vector.broadcast %16 : vector<1x2x1x512xf32> to vector<1x2x8x512xf32>
    %18 = vector.shape_cast %13 : vector<1x1x8x512xf32> to vector<1x1x8x512xf32>
    %19 = vector.broadcast %18 : vector<1x1x8x512xf32> to vector<1x2x8x512xf32>
    %20 = arith.select %15, %17, %19 : vector<1x2x8x512xi1>, vector<1x2x8x512xf32>
    %21 = vector.shape_cast %20 : vector<1x2x8x512xf32> to vector<2x8x512xf32>
    %c0_5 = arith.constant 0 : index
    %c0_6 = arith.constant 0 : index
    %c0_7 = arith.constant 0 : index
    %22 = vector.load %arg4[%c0_5, %c0_6, %c0_7] : memref<2x8x512xf32, #tpu.memory_space<vmem>>, vector<2x8x512xf32>
    tpu.vector_store %arg4[%c0_5, %c0_6, %c0_7], %21 {strides = array<i32>} : memref<2x8x512xf32, #tpu.memory_space<vmem>>, vector<2x8x512xf32>,
    return
  }
  func.func @transform_0(%arg0: i32) -> i32 {
    %c0_i32 = arith.constant 0 : i32
    %c0_i32_0 = arith.constant 0 : i32
    return %c0_i32 : i32
  }
  func.func @transform_1(%arg0: i32) -> (i32, i32) {
    %c0_i32 = arith.constant 0 : i32
    %c0_i32_0 = arith.constant 0 : i32
    %c0_i32_1 = arith.constant 0 : i32
    return %c0_i32, %c0_i32_0 : i32, i32
  }
  func.func @transform_2(%arg0: i32) -> (i32, i32, i32) {
    %c0_i32 = arith.constant 0 : i32
    %c0_i32_0 = arith.constant 0 : i32
    %c0_i32_1 = arith.constant 0 : i32
    return %arg0, %c0_i32, %c0_i32_0 : i32, i32, i32
  }
  func.func @transform_3(%arg0: i32) -> (i32, i32, i32) {
    %c0_i32 = arith.constant 0 : i32
    %c0_i32_0 = arith.constant 0 : i32
    %c0_i32_1 = arith.constant 0 : i32
    return %arg0, %c0_i32, %c0_i32_0 : i32, i32, i32
  }
}

</mosaic_0001>

<llo_original>
// kernel: tpu_custom_call.1
$region0: #{tpu_custom_call.1}
  #allocation0 [shape = 'u32[]', space=smem, size = 0x4, offset = 0x4, fixed_abs, tag = 'smem constant byte address 0x4 - core index']
  #allocation1 [shape = 'u32[72,128]{1,0:T(1,128)}', space=vmem, size = 0x9000, scoped, tag = 'internal scratch']
  #allocation2 [shape = 'f32[1]{0:T(128)S(6)}', space=smem, size = 0x200, scoped, tag = 'scoped memory for tpu_custom_call.1']
  %s0 = inlined_call_operand.<no memory space> [shape: f32[1], index: 0, kind: input, shape index: {}]
  %s1 = inlined_call_operand.hbm [shape: f32[2,512], index: 1, kind: input, shape index: {}]
  %s2 = inlined_call_operand.hbm [shape: f32[2,8,512], index: 2, kind: input, shape index: {}]
  %s3 = inlined_call_operand.hbm [shape: f32[4,8,512], index: 3, kind: output, shape index: {}]
  %s4 = sld [smem:[#allocation0]]
  $region53: #{tpu_custom_call.1} parent=0
    _
  %s6 = ssub.s32 1, %s4
  %s7 = scalar_select 0, %s6, %s4
  %8 = sst [smem:[#allocation2]] %s0
  $region1: #{tpu_custom_call.1} parent=0
    #allocation3 [shape = 'u8[4096]{0}', space=vmem, size = 0x1000, scoped, tag = 'input window, operand 1, single buffered']
    #allocation4 [shape = 's32[2]{0}', space=sflag, size = 0x8, scoped, tag = 'scoped memory for tpu_custom_call.1']
    #allocation5 [shape = 's32[2]{0}', space=sflag, size = 0x8, scoped, tag = 'scoped memory for tpu_custom_call.1']
    #allocation6 [shape = 'u8[32768]{0}', space=vmem, size = 0x8000, scoped, tag = 'input window, operand 2']
    #allocation7 [shape = 's32[2]{0}', space=sflag, size = 0x8, scoped, tag = 'scoped memory for tpu_custom_call.1']
    #allocation8 [shape = 'u8[65536]{0}', space=vmem, size = 0x10000, scoped, tag = 'output window, operand 0']
    %9 = vsyncpa [#allocation4], 0
    %10 = vsyncpa [#allocation7], 0
    %s11 = scalar_lea.sflag [#allocation7], 1
    %12 = vsyncpa %s11, 0
    %13 = vsyncpa [#allocation5], 0
    %s14 = scalar_lea.sflag [#allocation5], 1
    %15 = vsyncpa %s14, 0
    loop: start=0, step=1, limit=4
    $region2: #{tpu_custom_call.1} parent=1 // loop_pre_header
      _
    $region3: #{tpu_custom_call.1} parent=1 // loop_header
      %s17 = sphi 0, %s21
      %p18 = scmp.ge.s32.totalorder %s17, 4
      %s25 = sphi 0, %s25
      %s27 = sphi 0, %s25
      %s28 = sphi 0, %s27
      %s42 = sphi 0, %s28
      %s46 = sphi 0, %s46
      %s48 = sphi 0, %s46
      %s49 = sphi 0, %s48
      %s63 = sphi 0, %s49
      %s69 = sphi 0, %s71
      %s72 = sphi 0, %s69
      %s73 = sphi 0, %s72
      %s89 = sphi 0, %s73
      %s95 = sphi 0, %s97
      %s98 = sphi 0, %s95
      %s99 = sphi 0, %s98
      %s115 = sphi 0, %s99
    $region4: #{tpu_custom_call.1} parent=1 // loop_header_branch
      %20 = sbr.rel (%p18) target = $region8
    $region5: #{tpu_custom_call.1} parent=1 // loop_body
      %s22 = ssub.s32 %s17, 1
      %s23 = ssub.s32 %s17, 2
      %s24 = sadd.s32 %s17, 1
      %s26 = sadd.s32 %s25, 1
      %p29 = scmp.eq.s32.totalorder %s17, 1
      %p30 = scmp.ne.s32.totalorder %s25, %s27
      %p31 = scmp.eq.s32.totalorder %s17, 0
      %p32 = por %p30, %p31
      %p33 = scmp.ne.s32.totalorder %s25, %s27
      %p34 = scmp.eq.s32.totalorder %s22, 1
      %p35 = por %p33, %p34
      %p36 = scmp.ne.s32.totalorder %s27, %s28
      %p37 = scmp.eq.s32.totalorder %s22, 0
      %p38 = por %p36, %p37
      %p39 = scmp.ne.s32.totalorder %s27, %s28
      %p40 = scmp.eq.s32.totalorder %s23, 1
      %p41 = por %p39, %p40
      %p43 = scmp.ne.s32.totalorder %s28, %s42
      %p44 = scmp.eq.s32.totalorder %s23, 0
      %p45 = por %p43, %p44
      %s47 = sadd.s32 %s46, 1
      %p50 = scmp.eq.s32.totalorder %s17, 1
      %p51 = scmp.ne.s32.totalorder %s46, %s48
      %p52 = scmp.eq.s32.totalorder %s17, 0
      %p53 = por %p51, %p52
      %p54 = scmp.ne.s32.totalorder %s46, %s48
      %p55 = scmp.eq.s32.totalorder %s22, 1
      %p56 = por %p54, %p55
      %p57 = scmp.ne.s32.totalorder %s48, %s49
      %p58 = scmp.eq.s32.totalorder %s22, 0
      %p59 = por %p57, %p58
      %p60 = scmp.ne.s32.totalorder %s48, %s49
      %p61 = scmp.eq.s32.totalorder %s23, 1
      %p62 = por %p60, %p61
      %p64 = scmp.ne.s32.totalorder %s49, %s63
      %p65 = scmp.eq.s32.totalorder %s23, 0
      %p66 = por %p64, %p65
      %s67 = ssub.s32 %s17, %s24
      %p68 = scmp.eq.s32.totalorder %s67, 0
      %s70 = sadd.s32 %s69, 1
      %s71 = scalar_select %p68, %s69, %s70
      %p74 = pneg %p68
      %p75 = scmp.eq.s32.totalorder %s17, 1
      %p76 = por %p74, %p75
      %p77 = scmp.ne.s32.totalorder %s69, %s72
      %p78 = scmp.eq.s32.totalorder %s17, 0
      %p79 = por %p77, %p78
      %p80 = scmp.ne.s32.totalorder %s69, %s72
      %p81 = scmp.eq.s32.totalorder %s22, 1
      %p82 = por %p80, %p81
      %p83 = scmp.ne.s32.totalorder %s72, %s73
      %p84 = scmp.eq.s32.totalorder %s22, 0
      %p85 = por %p83, %p84
      %p86 = scmp.ne.s32.totalorder %s72, %s73
      %p87 = scmp.eq.s32.totalorder %s23, 1
      %p88 = por %p86, %p87
      %p90 = scmp.ne.s32.totalorder %s73, %s89
      %p91 = scmp.eq.s32.totalorder %s23, 0
      %p92 = por %p90, %p91
      %s93 = ssub.s32 %s17, %s24
      %p94 = scmp.eq.s32.totalorder %s93, 0
      %s96 = sadd.s32 %s95, 1
      %s97 = scalar_select %p94, %s95, %s96
      %p100 = pneg %p94
      %p101 = scmp.eq.s32.totalorder %s17, 1
      %p102 = por %p100, %p101
      %p103 = scmp.ne.s32.totalorder %s95, %s98
      %p104 = scmp.eq.s32.totalorder %s17, 0
      %p105 = por %p103, %p104
      %p106 = scmp.ne.s32.totalorder %s95, %s98
      %p107 = scmp.eq.s32.totalorder %s22, 1
      %p108 = por %p106, %p107
      %p109 = scmp.ne.s32.totalorder %s98, %s99
      %p110 = scmp.eq.s32.totalorder %s22, 0
      %p111 = por %p109, %p110
      %p112 = scmp.ne.s32.totalorder %s98, %s99
      %p113 = scmp.eq.s32.totalorder %s23, 1
      %p114 = por %p112, %p113
      %p116 = scmp.ne.s32.totalorder %s99, %s115
      %p117 = scmp.eq.s32.totalorder %s23, 0
      %p118 = por %p116, %p117
      %p119 = scmp.le.s32.totalorder 1, %s17
      %p120 = scmp.lt.s32.totalorder %s17, 3
      %p121 = pnand %p119, %p120
      %p122 = pneg %p121
      // Predicated region
      $region9: #{tpu_custom_call.1} parent=5 // pred_check
        _
      $region10: #{tpu_custom_call.1} parent=5 // pred_check_branch
        %124 = sbr.rel (%p121) target = $region12
      $region11: #{tpu_custom_call.1} parent=5 // pred_region
        %s125 = ssub.s32 %s17, 1
        // Predicated region
        $region13: #{tpu_custom_call.1} parent=11 // pred_check
          %p126 = pneg %p38
        $region14: #{tpu_custom_call.1} parent=11 // pred_check_branch
          %128 = sbr.rel (%p126) target = $region16
        $region15: #{tpu_custom_call.1} parent=11 // pred_region
          _
        $region16: #{tpu_custom_call.1} parent=11 // pred_fallthru
          _
        // Predicated region
        $region17: #{tpu_custom_call.1} parent=11 // pred_check
          %p129 = pneg %p59
        $region18: #{tpu_custom_call.1} parent=11 // pred_check_branch
          %131 = sbr.rel (%p129) target = $region20
        $region19: #{tpu_custom_call.1} parent=11 // pred_region
          %133 = vsyncadd [#allocation4], 0
          %s135 = sshll.u32 %s1, 4
          %s136 = int_to_ptr.hbm [resolvable:$true] %s135
          %s137 = sshll.u32 [#allocation3], 4
          %s138 = int_to_ptr.vmem [resolvable:$true] %s137
          %140 = dma.hbm_to_vmem [thread:$0]  %s136, 128, %s138, [#allocation4]
        $region20: #{tpu_custom_call.1} parent=11 // pred_fallthru
          _
      $region12: #{tpu_custom_call.1} parent=5 // pred_fallthru
        _
      %p141 = scmp.lt.s32.totalorder %s17, 2
      // Predicated region
      $region21: #{tpu_custom_call.1} parent=5 // pred_check
        %p142 = pneg %p141
      $region22: #{tpu_custom_call.1} parent=5 // pred_check_branch
        %144 = sbr.rel (%p142) target = $region24
      $region23: #{tpu_custom_call.1} parent=5 // pred_region
        // Predicated region
        $region25: #{tpu_custom_call.1} parent=23 // pred_check
          %p145 = pneg %p79
        $region26: #{tpu_custom_call.1} parent=23 // pred_check_branch
          %147 = sbr.rel (%p145) target = $region28
        $region27: #{tpu_custom_call.1} parent=23 // pred_region
          %s148 = sand.u32 %s69, 1
          %s149 = scalar_lea.sflag [#allocation7], %s148
          %s150 = sand.u32 %s69, 1
          %s151 = smul.addr %s150, 32
          %s152 = scalar_lea.vmem [#allocation6], %s151
          %154 = vsyncadd %s149, 0
          %s155 = smul.addr %s17, 4
          %s156 = smul.addr %s155, 8
          %s157 = scalar_lea.hbm %s2, %s156
          %s159 = sshll.u32 %s157, 4
          %s160 = int_to_ptr.hbm [resolvable:$true] %s159
          %s161 = sshll.u32 %s152, 4
          %s162 = int_to_ptr.vmem [resolvable:$true] %s161
          %164 = dma.hbm_to_vmem [thread:$0]  %s160, 512, %s162, %s149
        $region28: #{tpu_custom_call.1} parent=23 // pred_fallthru
          _
      $region24: #{tpu_custom_call.1} parent=5 // pred_fallthru
        _
      %p165 = scmp.le.s32.totalorder 1, %s17
      %p166 = scmp.lt.s32.totalorder %s17, 3
      %p167 = pnand %p165, %p166
      %p168 = pneg %p167
      // Predicated region
      $region29: #{tpu_custom_call.1} parent=5 // pred_check
        _
      $region30: #{tpu_custom_call.1} parent=5 // pred_check_branch
        %170 = sbr.rel (%p167) target = $region32
      $region31: #{tpu_custom_call.1} parent=5 // pred_region
        %s171 = ssub.s32 %s17, 1
        // Predicated region
        $region33: #{tpu_custom_call.1} parent=31 // pred_check
          %p172 = pneg %p59
        $region34: #{tpu_custom_call.1} parent=31 // pred_check_branch
          %174 = sbr.rel (%p172) target = $region36
        $region35: #{tpu_custom_call.1} parent=31 // pred_region
          %176 = dma.done [#allocation4], 128
        $region36: #{tpu_custom_call.1} parent=31 // pred_fallthru
          _
        %s177 = sand.u32 %s72, 1
        %s178 = scalar_lea.sflag [#allocation7], %s177
        %s179 = sand.u32 %s72, 1
        %s180 = smul.addr %s179, 32
        %s181 = scalar_lea.vmem [#allocation6], %s180
        // Predicated region
        $region37: #{tpu_custom_call.1} parent=31 // pred_check
          %p182 = pneg %p85
        $region38: #{tpu_custom_call.1} parent=31 // pred_check_branch
          %184 = sbr.rel (%p182) target = $region40
        $region39: #{tpu_custom_call.1} parent=31 // pred_region
          %186 = dma.done %s178, 512
        $region40: #{tpu_custom_call.1} parent=31 // pred_fallthru
          _
        %p187 = pneg %p38
        %p188 = pneg %p35
        %p189 = pneg %p59
        %p190 = pneg %p56
        %s191 = sand.u32 %s72, 1
        %s192 = scalar_lea.sflag [#allocation7], %s191
        %s193 = sand.u32 %s72, 1
        %s194 = smul.addr %s193, 32
        %s195 = scalar_lea.vmem [#allocation6], %s194
        %p196 = pneg %p85
        %p197 = pneg %p82
        %p198 = pneg %p111
        %p199 = pneg %p108
        %s200 = sand.u32 %s98, 1
        %s201 = scalar_lea.sflag [#allocation5], %s200
        %s202 = sand.u32 %s98, 1
        %s203 = smul.addr %s202, 64
        %s204 = scalar_lea.vmem [#allocation8], %s203
        %s205 = smul.u32 2, %s22
        %s206 = sld [smem:[#allocation2]]
        %v207 = vld [vmem:[%s181] sm:$0xff]
        %v208 = vld [vmem:[%s181 + $0x8] sm:$0xff]
        %v209 = vld [vmem:[%s181 + $0x10] sm:$0xff]
        %v210 = vld [vmem:[%s181 + $0x18] sm:$0xff]
        %v211 = vld [vmem:[#allocation3] sm:$0xff]
        %v213 = vrot.slane %v211, 1
        %v214 = vrot.slane %v211, 2
        %v215 = vrot.slane %v211, 3
        %vm216 = vcmask 1040384
        %v217 = vsel %vm216, %v211, %v213
        %vm218 = vcmask 1042434
        %v219 = vsel %vm218, %v214, %v215
        %vm220 = vcmask 1041408
        %v221 = vsel %vm220, %v217, %v219
        %vm222 = vcmask 1041409
        %v223 = vsel %vm222, %v211, %v213
        %vm224 = vcmask 1043459
        %v225 = vsel %vm224, %v214, %v215
        %vm226 = vcmask 1042433
        %v227 = vsel %vm226, %v223, %v225
        %v228 = vrot.slane %v227, 1
        %v231 = vstv %s206
        %v232 = vmul.f32 %v231, %v207
        %v233 = vmul.f32 %v231, %v208
        %v234 = vmul.f32 %v231, %v209
        %v235 = vmul.f32 %v231, %v210
        %v240 = vrot.slane %v233, 7
        %v241 = vrot.slane %v234, 6
        %v242 = vrot.slane %v235, 5
        %v243 = vsel %vm216, %v232, %v240
        %v244 = vsel %vm218, %v241, %v242
        %v245 = vsel %vm220, %v243, %v244
        %v247 = vadd.f32 %v221, %v245
        %v248 = vadd.f32 %v228, %v245
        %v249 = vlaneseq
        %v250 = vshrl.u32 %v249, 7
        %vm251 = vcmp.lt.s32.totalorder %v250, 4
        %v252 = vsel %vm251, 1, 0
        %vm253 = vcmp.eq.s32.totalorder %v252, 1
        %v256 = vperm.slane %v247, 0
        %v257 = vperm.slane %v247, 1
        %v258 = vperm.slane %v247, 2
        %v259 = vperm.slane %v247, 3
        %v260 = vperm.slane %v248, 0
        %v261 = vperm.slane %v248, 1
        %v262 = vperm.slane %v248, 2
        %v263 = vperm.slane %v248, 3
        %v272 = vsel %vm253, %v256, %v207
        %v273 = vsel %vm253, %v257, %v208
        %v274 = vsel %vm253, %v258, %v209
        %v275 = vsel %vm253, %v259, %v210
        %v276 = vsel %vm253, %v260, %v207
        %v277 = vsel %vm253, %v261, %v208
        %v278 = vsel %vm253, %v262, %v209
        %v279 = vsel %vm253, %v263, %v210
        %280 = vst [vmem:[%s204] sm:$0xff] %v272
        %281 = vst [vmem:[%s204 + $0x8] sm:$0xff] %v273
        %282 = vst [vmem:[%s204 + $0x10] sm:$0xff] %v274
        %283 = vst [vmem:[%s204 + $0x18] sm:$0xff] %v275
        %284 = vst [vmem:[%s204 + $0x20] sm:$0xff] %v276
        %285 = vst [vmem:[%s204 + $0x28] sm:$0xff] %v277
        %286 = vst [vmem:[%s204 + $0x30] sm:$0xff] %v278
        %287 = vst [vmem:[%s204 + $0x38] sm:$0xff] %v279
        %s288 = sand.u32 %s98, 1
        %s289 = scalar_lea.sflag [#allocation5], %s288
        %s290 = sand.u32 %s98, 1
        %s291 = smul.addr %s290, 64
        %s292 = scalar_lea.vmem [#allocation8], %s291
        // Predicated region
        $region41: #{tpu_custom_call.1} parent=31 // pred_check
          %p293 = pneg %p108
        $region42: #{tpu_custom_call.1} parent=31 // pred_check_branch
          %295 = sbr.rel (%p293) target = $region44
        $region43: #{tpu_custom_call.1} parent=31 // pred_region
          %s296 = smul.u32 2, %s22
          %298 = vsyncadd %s289, 0
          %s299 = smul.addr %s296, 4
          %s300 = smul.addr %s299, 8
          %s301 = scalar_lea.hbm %s3, %s300
          %s302 = sshll.u32 %s292, 4
          %s303 = int_to_ptr.vmem [resolvable:$true] %s302
          %s304 = sshll.u32 %s301, 4
          %s305 = int_to_ptr.hbm [resolvable:$true] %s304
          %310 = dma.vmem_to_hbm [thread:$0]  %s303, 1024, %s305, %s289, 512, 512, 32
        $region44: #{tpu_custom_call.1} parent=31 // pred_fallthru
          _
      $region32: #{tpu_custom_call.1} parent=5 // pred_fallthru
        _
      %p311 = scmp.le.s32.totalorder 2, %s17
      // Predicated region
      $region45: #{tpu_custom_call.1} parent=5 // pred_check
        %p312 = pneg %p311
      $region46: #{tpu_custom_call.1} parent=5 // pred_check_branch
        %314 = sbr.rel (%p312) target = $region48
      $region47: #{tpu_custom_call.1} parent=5 // pred_region
        %s315 = ssub.s32 %s17, 2
        // Predicated region
        $region49: #{tpu_custom_call.1} parent=47 // pred_check
          %p316 = pneg %p114
        $region50: #{tpu_custom_call.1} parent=47 // pred_check_branch
          %318 = sbr.rel (%p316) target = $region52
        $region51: #{tpu_custom_call.1} parent=47 // pred_region
          %s319 = sand.u32 %s99, 1
          %s320 = scalar_lea.sflag [#allocation5], %s319
          %s321 = sand.u32 %s99, 1
          %s322 = smul.addr %s321, 64
          %s323 = scalar_lea.vmem [#allocation8], %s322
          %325 = dma.done %s320, 1024
        $region52: #{tpu_custom_call.1} parent=47 // pred_fallthru
          _
      $region48: #{tpu_custom_call.1} parent=5 // pred_fallthru
        _
    $region6: #{tpu_custom_call.1} parent=1 // loop_footer
      %s21 = sadd.s32 1, %s17
    $region7: #{tpu_custom_call.1} parent=1 // loop_footer_branch
      %16 = sbr.rel target = $region3
    $region8: #{tpu_custom_call.1} parent=1 // loop_exit
      _
    %326 = vsyncpa [#allocation4], 1
    %s327 = scalar_lea.sflag [#allocation4], 1
    %328 = vsyncpa %s327, 1
    %329 = vsyncpa [#allocation7], 1
    %s330 = scalar_lea.sflag [#allocation7], 1
    %331 = vsyncpa %s330, 1
    %332 = vsyncpa [#allocation5], 1
    %s333 = scalar_lea.sflag [#allocation5], 1
    %334 = vsyncpa %s333, 1

</llo_original>
